<compile_context>
chip_gen: v7x
topology: tpu7x:2x2x1
jax: 0.10.0
libtpu: 0.0.40
codegen_flags: <defaults>
</compile_context>

<pallas_src>
import functools

import jax
import jax.numpy as jnp
from jax.experimental import pallas as pl
from jax.experimental.pallas import tpu as pltpu

EPS = 1e-06

# --- tuning knobs ------------------------------------------------------------
_MAX_TILE_ROWS = 256                # row-tile cap for the streaming path
_MAX_TILE_BYTES = 8 * 1024 * 1024   # per feats input buffer (x2 when double-buffered)
_GATHER_MIN_HW = 64 * 1024          # stream below this many elems/row, DMA-gather above
_GATHER_CHUNK = 128                 # lanes fetched per point on the gather path
_GATHER_GROUP = 8                   # points handled per grid step on the gather path


def _vmem_limit_bytes(needed):
    """Per-generation VMEM limit: request what we need (>=32 MiB floor, needed
    on v5e) but never more than ~3/4 of physical per-core VMEM
    (48 MiB on v7x, 96 MiB on v5e/v6e)."""
    cap = None
    try:
        cap = getattr(pltpu.get_tpu_info(), "vmem_capacity_bytes", None)
    except Exception:
        cap = None
    if not cap:
        cap = 64 * 1024 * 1024      # assume the smallest (v7x per-TensorCore)
    hard_cap = max(32 * 1024 * 1024, min(96 * 1024 * 1024, (int(cap) * 3) // 4))
    want = max(32 * 1024 * 1024, int(needed) + 4 * 1024 * 1024)
    return int(min(want, hard_cap))


# --- streaming path (small H*W) ----------------------------------------------
def _stream_kernel(idx_ref, mask_ref, feats_ref, num_ref, den_ref):
    feats = feats_ref[...]                  # (tile_n, HW), native dtype
    flat_idx = idx_ref[...]                 # (tile_n, 1) int32

    # Gather feats[n, flat_idx[n]]: compare + select + lane reduction.  Raw
    # iota (no offset add) and native-dtype sum (exact: <=1 non-zero per row).
    col = jax.lax.broadcasted_iota(jnp.int32, feats.shape, 1)
    point = jnp.sum(jnp.where(col == flat_idx, feats, 0), axis=1, keepdims=True)
    point = point.astype(jnp.float32)

    mask = mask_ref[...]                    # (tile_n, 1) f32; 0 for padded/invalid rows
    per_loss = -jnp.log(jax.nn.sigmoid(point) + EPS)
    # where(mask > 0, ...) (instead of * mask) also neutralizes NaN/Inf gathered
    # from garbage rows of a partial (out-of-bounds) feats block.
    per_loss = jnp.where(mask > 0, per_loss, 0.0)
    num_ref[...] = jnp.sum(per_loss, keepdims=True)
    den_ref[...] = jnp.sum(mask, keepdims=True)


def _pointmax_stream(feats2, flat_idx, ind_mask, N, HW, itemsize):
    rows_align = {4: 8, 2: 16, 1: 32}.get(itemsize, 8)
    budget_rows = max(
        rows_align,
        (_MAX_TILE_BYTES // max(1, HW * itemsize)) // rows_align * rows_align)
    cap_rows = min(budget_rows, _MAX_TILE_ROWS)
    tile_n = N if N <= cap_rows else cap_rows      # full-dim block is always legal
    g_rows = pl.cdiv(N, tile_n)
    n_pad = g_rows * tile_n

    # Pad the tiny per-row arrays so padded rows arrive with mask == 0.
    pad = n_pad - N
    flat_idx_p = jnp.pad(flat_idx, (0, pad)).reshape(n_pad, 1)
    ind_mask_p = jnp.pad(ind_mask, (0, pad)).reshape(n_pad, 1)

    # feats double-buffer + lane-padded idx/mask + tiny outputs + slack.
    vmem_bytes = 2 * tile_n * HW * itemsize
    vmem_bytes += 2 * 2 * tile_n * 128 * 4
    vmem_bytes += 4 * 2 * 8 * 128 * 4 + 64 * 1024

    # NOTE: with the lane-chunk axis gone there is no serial grid axis left;
    # pl.Buffered(3) (a v7x-only tweak) only applies if lane chunking returns.
    num_part, den_part = pl.pallas_call(
        _stream_kernel,
        out_shape=(jax.ShapeDtypeStruct((g_rows, 1), jnp.float32),
                   jax.ShapeDtypeStruct((g_rows, 1), jnp.float32)),
        grid=(g_rows,),
        in_specs=[
            pl.BlockSpec((tile_n, 1), lambda i: (i, 0)),    # flat_idx
            pl.BlockSpec((tile_n, 1), lambda i: (i, 0)),    # ind_mask
            pl.BlockSpec((tile_n, HW), lambda i: (i, 0)),   # feats stream
        ],
        out_specs=(pl.BlockSpec((1, 1), lambda i: (i, 0)),
                   pl.BlockSpec((1, 1), lambda i: (i, 0))),
        compiler_params=pltpu.CompilerParams(
            dimension_semantics=("parallel",),
            vmem_limit_bytes=_vmem_limit_bytes(vmem_bytes)),
        cost_estimate=pl.CostEstimate(
            flops=3 * N * HW,
            transcendentals=2 * N,
            bytes_accessed=N * HW * itemsize + n_pad * 8 + g_rows * 8),
    )(flat_idx_p, ind_mask_p, feats2)
    return num_part, den_part


# --- DMA-gather path (large H*W) ---------------------------------------------
def _gather_kernel(chunk_ref, lane_ref, mask_ref, feats_hbm, num_ref, den_ref,
                   buf, sems, *, n_rows, group, chunk):
    base = pl.program_id(0) * group

    # One small DMA per point: the `chunk`-lane slab containing its flat index.
    # All `group` copies are in flight before any wait, hiding HBM latency.
    copies = []
    for k in range(group):                                  # static unroll
        row = jnp.minimum(base + k, n_rows - 1)             # clamp padded rows
        start = chunk_ref[base + k]                         # SMEM scalar read
        cp = pltpu.make_async_copy(
            feats_hbm.at[pl.ds(row, 1), pl.ds(start, chunk)],
            buf.at[pl.ds(k, 1)],
            sems.at[k])
        cp.start()
        copies.append(cp)
    for cp in copies:
        cp.wait()

    data = buf[...]                                         # (group, chunk), native dtype
    lane = lane_ref[...]                                    # (group, 1) int32 in-chunk offset
    col = jax.lax.broadcasted_iota(jnp.int32, data.shape, 1)
    point = jnp.sum(jnp.where(col == lane, data, 0), axis=1, keepdims=True)
    point = point.astype(jnp.float32)

    mask = mask_ref[...]
    per_loss = -jnp.log(jax.nn.sigmoid(point) + EPS)
    per_loss = jnp.where(mask > 0, per_loss, 0.0)
    num_ref[...] = jnp.sum(per_loss, keepdims=True)
    den_ref[...] = jnp.sum(mask, keepdims=True)


def _pointmax_gather(feats2, flat_idx, ind_mask, N, HW, itemsize):
    group = _GATHER_GROUP
    chunk = _GATHER_CHUNK
    g = pl.cdiv(N, group)
    n_pad = g * group
    pad = n_pad - N

    # 128-aligned slab start containing each point, clamped so the DMA never
    # reads past HW (handles an HW that is not a multiple of 128 without
    # padding the big feats array).  Requires HW >= chunk (guaranteed by the
    # dispatch condition).
    chunk_start = jnp.minimum((flat_idx // chunk) * chunk, HW - chunk).astype(jnp.int32)
    lane_off = (flat_idx - chunk_start).astype(jnp.int32)

    chunk_p = jnp.pad(chunk_start, (0, pad))
    lane_p = jnp.pad(lane_off, (0, pad)).reshape(n_pad, 1)
    mask_p = jnp.pad(ind_mask, (0, pad)).reshape(n_pad, 1)

    kernel = functools.partial(_gather_kernel, n_rows=N, group=group, chunk=chunk)

    num_part, den_part = pl.pallas_call(
        kernel,
        out_shape=(jax.ShapeDtypeStruct((g, 1), jnp.float32),
                   jax.ShapeDtypeStruct((g, 1), jnp.float32)),
        grid_spec=pltpu.PrefetchScalarGridSpec(
            num_scalar_prefetch=1,                           # chunk_start table -> SMEM
            grid=(g,),
            in_specs=[
                pl.BlockSpec((group, 1), lambda i, c: (i, 0)),   # lane offsets
                pl.BlockSpec((group, 1), lambda i, c: (i, 0)),   # ind_mask
                pl.BlockSpec(memory_space=pl.ANY),               # feats stays in HBM
            ],
            out_specs=(pl.BlockSpec((1, 1), lambda i, c: (i, 0)),
                       pl.BlockSpec((1, 1), lambda i, c: (i, 0))),
            scratch_shapes=[pltpu.VMEM((group, chunk), feats2.dtype),
                            pltpu.SemaphoreType.DMA((group,))]),
        compiler_params=pltpu.CompilerParams(
            dimension_semantics=("parallel",)),
        cost_estimate=pl.CostEstimate(
            flops=3 * N * chunk,
            transcendentals=2 * N,
            bytes_accessed=N * (chunk * itemsize + 12) + g * 8),
    )(chunk_p, lane_p, mask_p, feats2)
    return num_part, den_part


# --- wrapper ------------------------------------------------------------------
def _decode_points(xyens, H, W):
    xy = xyens.reshape(-1, 3)
    x = xy[:, 0].astype(jnp.int32)      # trunc toward zero == torch .long()
    y = xy[:, 1].astype(jnp.int32)
    exist = xy[:, 2]
    valid_x = (x >= 0) & (x < W)
    valid_y = (y >= 0) & (y < H)
    xc = jnp.where(valid_x, x, 0)
    yc = jnp.where(valid_y, y, 0)
    ind_mask = ((exist > 0) & valid_x & valid_y).astype(jnp.float32)
    flat_idx = yc * W + xc
    return flat_idx, ind_mask


def pointmax(feats, xyens, w=1.0, gather_min_hw=_GATHER_MIN_HW):
    """PointMax forward.  feats: (B, C, H, W), xyens: (..., 3) with B*C points."""
    B, C, H, W = feats.shape
    N = B * C
    HW = H * W
    itemsize = jnp.dtype(feats.dtype).itemsize

    feats2 = feats.reshape(N, HW)       # free view for contiguous NCHW
    flat_idx, ind_mask = _decode_points(xyens, H, W)

    rows_align = {4: 8, 2: 16, 1: 32}.get(itemsize, 8)
    use_gather = HW >= _GATHER_CHUNK and (
        HW >= max(_GATHER_CHUNK, gather_min_hw)
        or rows_align * HW * itemsize > _MAX_TILE_BYTES)

    if use_gather:
        num_part, den_part = _pointmax_gather(feats2, flat_idx, ind_mask, N, HW, itemsize)
    else:
        num_part, den_part = _pointmax_stream(feats2, flat_idx, ind_mask, N, HW, itemsize)

    loss = (jnp.sum(num_part) / (jnp.sum(den_part) + EPS)) * jnp.float32(w)
    return loss


def pointmax_ref(feats, xyens, w=1.0):
    """Pure-JAX reference mirroring the PyTorch module."""
    B, C, H, W = feats.shape
    xy = xyens.reshape(-1, 3)
    x = xy[:, 0].astype(jnp.int32)
    y = xy[:, 1].astype(jnp.int32)
    exist = xy[:, 2].astype(feats.dtype)
    valid_x = (x >= 0) & (x < W)
    valid_y = (y >= 0) & (y < H)
    xc = jnp.where(valid_x, x, 0)
    yc = jnp.where(valid_y, y, 0)
    ind_mask = ((exist > 0) & valid_x & valid_y).astype(feats.dtype)
    flat = feats.reshape(B * C, H * W)
    pf = flat[jnp.arange(B * C), yc * W + xc]
    loss = -jnp.log(jax.nn.sigmoid(pf) + EPS)
    return ((loss * ind_mask).sum() / (ind_mask.sum() + EPS)) * w


if __name__ == "__main__":
    key = jax.random.PRNGKey(0)

    def make_case(k, B, C, H, W):
        k1, k2, k3, k4 = jax.random.split(k, 4)
        feats = jax.random.normal(k1, (B, C, H, W), dtype=jnp.float32)
        # xyens: (B, C, 3) = (x, y, exist); include out-of-range coords and
        # exist=0 entries to exercise the masking path.
        xs = jax.random.randint(k2, (B, C), -2, W + 2).astype(jnp.float32)
        ys = jax.random.randint(k3, (B, C), -2, H + 2).astype(jnp.float32)
        exist = (jax.random.uniform(k4, (B, C)) > 0.25).astype(jnp.float32)
        xyens = jnp.stack([xs, ys, exist], axis=-1)
        return feats, xyens

    ka, kb, kc, kd = jax.random.split(key, 4)

    # Case 1: canonical small shape (streaming path).
    feats_a, xyens_a = make_case(ka, 2, 4, 16, 16)
    loss_a = pointmax(feats_a, xyens_a, w=1.0)
    jax.block_until_ready(loss_a)
    ref_a = pointmax_ref(feats_a, xyens_a, w=1.0)
    assert jnp.allclose(loss_a, ref_a, atol=1e-5, rtol=1e-5), (loss_a, ref_a)

    # Case 2: point count not a multiple of 8, odd spatial extent (streaming).
    feats_b, xyens_b = make_case(kb, 3, 5, 24, 20)
    loss_b = pointmax(feats_b, xyens_b, w=0.5)
    jax.block_until_ready(loss_b)
    ref_b = pointmax_ref(feats_b, xyens_b, w=0.5)
    assert jnp.allclose(loss_b, ref_b, atol=1e-5, rtol=1e-5), (loss_b, ref_b)

    # Case 3: force the DMA-gather path at a small shape (H*W = 540 >= 128;
    # N = 10 > group, so group padding / row clamping and the lane clamp for
    # the partial last 128-lane block are all exercised).
    feats_c, xyens_c = make_case(kc, 2, 5, 18, 30)
    loss_c = pointmax(feats_c, xyens_c, w=2.0, gather_min_hw=128)
    jax.block_until_ready(loss_c)
    ref_c = pointmax_ref(feats_c, xyens_c, w=2.0)
    assert jnp.allclose(loss_c, ref_c, atol=1e-5, rtol=1e-5), (loss_c, ref_c)

    # Case 4: more points than one row tile (multi-tile streaming, partial
    # last row tile, row padding).
    feats_d, xyens_d = make_case(kd, 16, 20, 16, 16)
    loss_d = pointmax(feats_d, xyens_d, w=1.5)
    jax.block_until_ready(loss_d)
    ref_d = pointmax_ref(feats_d, xyens_d, w=1.5)
    assert jnp.allclose(loss_d, ref_d, atol=1e-5, rtol=1e-5), (loss_d, ref_d)

    print("KERNEL_OK")
</pallas_src>

<mosaic_0001>
module attributes {stable_mosaic.version = 11 : i64} {
  func.func @_stream_kernel(%arg0: i32, %arg1: memref<8x1xi32, #tpu.memory_space<vmem>>, %arg2: memref<8x1xf32, #tpu.memory_space<vmem>>, %arg3: memref<8x256xf32, #tpu.memory_space<vmem>>, %arg4: memref<1x1xf32, #tpu.memory_space<vmem>>, %arg5: memref<1x1xf32, #tpu.memory_space<vmem>>) attributes {dimension_semantics = [#tpu.dimension_semantics<parallel>], iteration_bounds = array<i64: 1>, scalar_prefetch = 0 : i64, scratch_operands = 0 : i64, tpu.core_type = #tpu.core_type<tc>, window_params = [{transform_indices = @transform_0, window_bounds = array<i64: 8, 1>}, {transform_indices = @transform_1, window_bounds = array<i64: 8, 1>}, {transform_indices = @transform_2, window_bounds = array<i64: 8, 256>}, {transform_indices = @transform_3, window_bounds = array<i64: 1, 1>}, {transform_indices = @transform_4, window_bounds = array<i64: 1, 1>}]} {
    %c0 = arith.constant 0 : index
    %c0_0 = arith.constant 0 : index
    %0 = vector.load %arg3[%c0, %c0_0] : memref<8x256xf32, #tpu.memory_space<vmem>>, vector<8x256xf32>
    %c0_1 = arith.constant 0 : index
    %c0_2 = arith.constant 0 : index
    %1 = vector.load %arg1[%c0_1, %c0_2] : memref<8x1xi32, #tpu.memory_space<vmem>>, vector<8x1xi32>
    %2 = tpu.iota {dimensions = array<i32: 1>} : vector<8x256xi32>
    %3 = vector.broadcast %1 : vector<8x1xi32> to vector<8x256xi32>
    %4 = arith.cmpi eq, %2, %3 : vector<8x256xi32>
    %c0_i32 = arith.constant 0 : i32
    %5 = arith.sitofp %c0_i32 : i32 to f32
    %6 = vector.broadcast %5 : f32 to vector<8x256xf32>
    %7 = arith.select %4, %0, %6 : vector<8x256xi1>, vector<8x256xf32>
    %cst = arith.constant dense<0.000000e+00> : vector<8xf32>
    %8 = vector.multi_reduction <add>, %7, %cst [1] : vector<8x256xf32> to vector<8xf32>
    %9 = vector.shape_cast %8 : vector<8xf32> to vector<8x1xf32>
    %c0_3 = arith.constant 0 : index
    %c0_4 = arith.constant 0 : index
    %10 = vector.load %arg2[%c0_3, %c0_4] : memref<8x1xf32, #tpu.memory_space<vmem>>, vector<8x1xf32>
    %11 = arith.negf %9 : vector<8x1xf32>
    %12 = math.exp %11 : vector<8x1xf32>
    %cst_5 = arith.constant 1.000000e+00 : f32
    %13 = vector.broadcast %cst_5 : f32 to vector<8x1xf32>
    %14 = arith.addf %13, %12 : vector<8x1xf32>
    %15 = arith.divf %13, %14 : vector<8x1xf32>
    %cst_6 = arith.constant 9.99999997E-7 : f32
    %16 = vector.broadcast %cst_6 : f32 to vector<8x1xf32>
    %17 = arith.addf %15, %16 : vector<8x1xf32>
    %18 = math.log %17 : vector<8x1xf32>
    %cst_7 = arith.constant 0.000000e+00 : f32
    %19 = vector.broadcast %cst_7 : f32 to vector<8x1xf32>
    %20 = arith.subf %19, %18 : vector<8x1xf32>
    %cst_8 = arith.constant 0.000000e+00 : f32
    %21 = vector.broadcast %cst_8 : f32 to vector<8x1xf32>
    %22 = arith.cmpf ogt, %10, %21 : vector<8x1xf32>
    %cst_9 = arith.constant 0.000000e+00 : f32
    %23 = vector.broadcast %cst_9 : f32 to vector<8x1xf32>
    %24 = arith.select %22, %20, %23 : vector<8x1xi1>, vector<8x1xf32>
    %25 = vector.shape_cast %24 : vector<8x1xf32> to vector<1x8x1xf32>
    %cst_10 = arith.constant dense<0.000000e+00> : vector<1xf32>
    %26 = vector.multi_reduction <add>, %25, %cst_10 [1, 2] : vector<1x8x1xf32> to vector<1xf32>
    %27 = vector.shape_cast %26 : vector<1xf32> to vector<1x1x1xf32>
    %28 = vector.extract %27[0, 0, 0] : f32 from vector<1x1x1xf32>
    %29 = vector.broadcast %28 : f32 to vector<1x1xf32>
    %c0_11 = arith.constant 0 : index
    %c0_12 = arith.constant 0 : index
    %30 = vector.load %arg4[%c0_11, %c0_12] : memref<1x1xf32, #tpu.memory_space<vmem>>, vector<1x1xf32>
    tpu.vector_store %arg4[%c0_11, %c0_12], %29 {strides = array<i32>} : memref<1x1xf32, #tpu.memory_space<vmem>>, vector<1x1xf32>,
    %31 = vector.shape_cast %10 : vector<8x1xf32> to vector<1x8x1xf32>
    %cst_13 = arith.constant dense<0.000000e+00> : vector<1xf32>
    %32 = vector.multi_reduction <add>, %31, %cst_13 [1, 2] : vector<1x8x1xf32> to vector<1xf32>
    %33 = vector.shape_cast %32 : vector<1xf32> to vector<1x1x1xf32>
    %34 = vector.extract %33[0, 0, 0] : f32 from vector<1x1x1xf32>
    %35 = vector.broadcast %34 : f32 to vector<1x1xf32>
    %c0_14 = arith.constant 0 : index
    %c0_15 = arith.constant 0 : index
    %36 = vector.load %arg5[%c0_14, %c0_15] : memref<1x1xf32, #tpu.memory_space<vmem>>, vector<1x1xf32>
    tpu.vector_store %arg5[%c0_14, %c0_15], %35 {strides = array<i32>} : memref<1x1xf32, #tpu.memory_space<vmem>>, vector<1x1xf32>,
    return
  }
  func.func @transform_0(%arg0: i32) -> (i32, i32) {
    %c0_i32 = arith.constant 0 : i32
    %c0_i32_0 = arith.constant 0 : i32
    return %arg0, %c0_i32 : i32, i32
  }
  func.func @transform_1(%arg0: i32) -> (i32, i32) {
    %c0_i32 = arith.constant 0 : i32
    %c0_i32_0 = arith.constant 0 : i32
    return %arg0, %c0_i32 : i32, i32
  }
  func.func @transform_2(%arg0: i32) -> (i32, i32) {
    %c0_i32 = arith.constant 0 : i32
    %c0_i32_0 = arith.constant 0 : i32
    return %arg0, %c0_i32 : i32, i32
  }
  func.func @transform_3(%arg0: i32) -> (i32, i32) {
    %c0_i32 = arith.constant 0 : i32
    %c0_i32_0 = arith.constant 0 : i32
    return %arg0, %c0_i32 : i32, i32
  }
  func.func @transform_4(%arg0: i32) -> (i32, i32) {
    %c0_i32 = arith.constant 0 : i32
    %c0_i32_0 = arith.constant 0 : i32
    return %arg0, %c0_i32 : i32, i32
  }
}

</mosaic_0001>

<llo_original>
// kernel: tpu_custom_call.1
$region0: #{tpu_custom_call.1}
  #allocation0 [shape = 'u32[]', space=smem, size = 0x4, offset = 0x4, fixed_abs, tag = 'smem constant byte address 0x4 - core index']
  #allocation1 [shape = 'u32[144,128]{1,0:T(1,128)}', space=vmem, size = 0x12000, scoped, tag = 'internal scratch']
  %s0 = inlined_call_operand.vmem [shape: s32[8,1], index: 0, kind: input, shape index: {}]
  %s1 = inlined_call_operand.vmem [shape: f32[8,1], index: 1, kind: input, shape index: {}]
  %s2 = inlined_call_operand.vmem [shape: f32[8,256], index: 2, kind: input, shape index: {}]
  %s3 = inlined_call_operand.hbm [shape: f32[1,1], index: 3, kind: output, shape index: {0}]
  %s4 = inlined_call_operand.hbm [shape: f32[1,1], index: 4, kind: output, shape index: {1}]
  %5 = xla_tuple %s3, %s4
  %s6 = sld [smem:[#allocation0]]
  $region30: #{tpu_custom_call.1} parent=0
    _
  %s8 = ssub.s32 1, %s6
  %s9 = scalar_select 0, %s8, %s6
  $region1: #{tpu_custom_call.1} parent=0
    #allocation2 [shape = 'u8[512]{0}', space=vmem, size = 0x400, scoped, tag = 'output window, operand 0, single buffered']
    #allocation3 [shape = 's32[1]{0}', space=sflag, size = 0x4, scoped, tag = 'scoped memory for tpu_custom_call.1']
    #allocation4 [shape = 'u8[512]{0}', space=vmem, size = 0x400, scoped, tag = 'output window, operand 1, single buffered']
    #allocation5 [shape = 's32[1]{0}', space=sflag, size = 0x4, scoped, tag = 'scoped memory for tpu_custom_call.1']
    %10 = vsyncpa [#allocation3], 0
    %11 = vsyncpa [#allocation5], 0
    // Predicated region
    $region2: #{tpu_custom_call.1} parent=1 // pred_check
      _
    $region3: #{tpu_custom_call.1} parent=1 // pred_check_branch
      %13 = sbr.rel (0) target = $region5
    $region4: #{tpu_custom_call.1} parent=1 // pred_region
      _
    $region5: #{tpu_custom_call.1} parent=1 // pred_fallthru
      _
    // Predicated region
    $region6: #{tpu_custom_call.1} parent=1 // pred_check
      _
    $region7: #{tpu_custom_call.1} parent=1 // pred_check_branch
      %15 = sbr.rel (0) target = $region9
    $region8: #{tpu_custom_call.1} parent=1 // pred_region
      _
    $region9: #{tpu_custom_call.1} parent=1 // pred_fallthru
      _
    // Predicated region
    $region10: #{tpu_custom_call.1} parent=1 // pred_check
      _
    $region11: #{tpu_custom_call.1} parent=1 // pred_check_branch
      %17 = sbr.rel (0) target = $region13
    $region12: #{tpu_custom_call.1} parent=1 // pred_region
      _
    $region13: #{tpu_custom_call.1} parent=1 // pred_fallthru
      _
    %v18 = vld [vmem:[%s2] sm:$0xff]
    %v19 = vld [vmem:[%s2 + $0x8] sm:$0xff]
    %v20 = vld [vmem:[%s0] sm:$0xff]
    %v21 = vlaneseq
    %v22 = vand.u32 %v21, 127
    %v23 = vadd.s32 %v22, 128
    %24 = vset.pattern.permute.xlu0 0
    %25 = vperm.xlu0 %24, %v20
    %v26 = vpop.permute.xlu0 %25
    %vm27 = vcmp.eq.s32.totalorder %v22, %v26
    %vm28 = vcmp.eq.s32.totalorder %v23, %v26
    %v29 = vsel %vm27, %v18, 0.0
    %v30 = vsel %vm28, %v19, 0.0
    %v31 = vadd.f32 %v29, %v30
    %32 = vadd.xlane.f32.xlu0 %v31
    %v33 = vpop.xlane.xlu0 %32
    %v34 = vld [vmem:[%s1] sm:$0xff]
    %v35 = vxor.u32 %v33, 2147483648
    %v36 = vmul.f32 %v35, 1.442695
    %v37 = vpow.pop %v36
    %v38 = vadd.f32 %v37, 1.0
    %v39 = vrcp.pop %v38
    %v40 = vmul.f32 1.0, %v39
    %v41 = vadd.f32 %v40, 1e-06
    %v42 = vlog2.pop %v41
    %v43 = vmul.f32 %v42, 0.6931472
    %v44 = vsub.f32 0.0, %v43
    %vm45 = vcmp.gt.f32.partialorder %v34, 0.0
    %v46 = vsel %vm45, %v44, 0.0
    %vm47 = vcmask 7168
    %v48 = vsel %vm47, %v46, 0.0
    %49 = vadd.xlane.f32.xlu0 %v48
    %v50 = vpop.xlane.xlu0 %49
    %v51 = vrot.slane %v50, 4
    %v52 = vadd.f32 %v50, %v51
    %v53 = vrot.slane %v52, 2
    %v54 = vadd.f32 %v52, %v53
    %v55 = vrot.slane %v54, 1
    %v56 = vadd.f32 %v54, %v55
    %s57 = vtos %v56
    %v58 = vstv %s57
    %vm59 = vcmask 0
    %60 = vst.msk [vmem:[#allocation2] sm:$0x1] %vm59, %v58
    %v61 = vsel %vm47, %v34, 0.0
    %62 = vadd.xlane.f32.xlu0 %v61
    %v63 = vpop.xlane.xlu0 %62
    %v64 = vrot.slane %v63, 4
    %v65 = vadd.f32 %v63, %v64
    %v66 = vrot.slane %v65, 2
    %v67 = vadd.f32 %v65, %v66
    %v68 = vrot.slane %v67, 1
    %v69 = vadd.f32 %v67, %v68
    %s70 = vtos %v69
    %v71 = vstv %s70
    %72 = vst.msk [vmem:[#allocation4] sm:$0x1] %vm59, %v71
    // Predicated region
    $region14: #{tpu_custom_call.1} parent=1 // pred_check
      _
    $region15: #{tpu_custom_call.1} parent=1 // pred_check_branch
      %74 = sbr.rel (0) target = $region17
    $region16: #{tpu_custom_call.1} parent=1 // pred_region
      %s76 = ssub.s32 16, 16
      %77 = vsyncadd [#allocation3], %s76
      %s79 = sshll.u32 [#allocation2], 4
      %s80 = int_to_ptr.vmem [resolvable:$true] %s79
      %82 = dma.vmem_to_hbm [thread:$0]  %s80, 16, %s3, [#allocation3]
    $region17: #{tpu_custom_call.1} parent=1 // pred_fallthru
      _
    // Predicated region
    $region18: #{tpu_custom_call.1} parent=1 // pred_check
      _
    $region19: #{tpu_custom_call.1} parent=1 // pred_check_branch
      %84 = sbr.rel (0) target = $region21
    $region20: #{tpu_custom_call.1} parent=1 // pred_region
      %s86 = ssub.s32 16, 16
      %87 = vsyncadd [#allocation5], %s86
      %s89 = sshll.u32 [#allocation4], 4
      %s90 = int_to_ptr.vmem [resolvable:$true] %s89
      %92 = dma.vmem_to_hbm [thread:$0]  %s90, 16, %s4, [#allocation5]
    $region21: #{tpu_custom_call.1} parent=1 // pred_fallthru
      _
    // Predicated region
    $region22: #{tpu_custom_call.1} parent=1 // pred_check
      _
    $region23: #{tpu_custom_call.1} parent=1 // pred_check_branch
      %94 = sbr.rel (0) target = $region25
    $region24: #{tpu_custom_call.1} parent=1 // pred_region
      %95 = dma.done [#allocation3], 16
    $region25: #{tpu_custom_call.1} parent=1 // pred_fallthru
      _
    // Predicated region
    $region26: #{tpu_custom_call.1} parent=1 // pred_check
      _
    $region27: #{tpu_custom_call.1} parent=1 // pred_check_branch
      %97 = sbr.rel (0) target = $region29
    $region28: #{tpu_custom_call.1} parent=1 // pred_region
      %98 = dma.done [#allocation5], 16
    $region29: #{tpu_custom_call.1} parent=1 // pred_fallthru
      _
    %99 = vsyncpa [#allocation3], 1
    %100 = vsyncpa [#allocation5], 1

</llo_original>
